<compile_context>
chip_gen: v7x
topology: tpu7x:2x2x1
jax: 0.10.0
libtpu: 0.0.40
codegen_flags: <defaults>
</compile_context>

<pallas_src>
import jax
import jax.numpy as jnp
from jax.experimental import pallas as pl
from jax.experimental.pallas import tpu as pltpu

_EPS = 1e-8


def _round_up(x, m):
    return ((x + m - 1) // m) * m


def _pair_cosine_kernel(idx_ref, ent_ref, out_ref):
    # idx_ref: (2, TILE) int32 pair indices (row 0 = first, row 1 = second).
    # ent_ref: (D_pad, N_pad) row-normalized embeddings, feature-major, resident.
    # out_ref: (1, 1, TILE) float32 cosine similarities (lane-dense).
    ent = ent_ref[...]
    n_pad = ent.shape[1]
    tile = out_ref.shape[-1]

    iota = jax.lax.broadcasted_iota(jnp.int32, (n_pad, tile), 0)
    oh0 = (iota == idx_ref[0:1, :]).astype(ent.dtype)   # (N_pad, TILE) one-hot
    oh1 = (iota == idx_ref[1:2, :]).astype(ent.dtype)

    # In-kernel gather on the MXU: column p of x?t is the selected embedding row.
    x1t = jnp.dot(ent, oh0, preferred_element_type=jnp.float32)  # (D_pad, TILE)
    x2t = jnp.dot(ent, oh1, preferred_element_type=jnp.float32)

    # Rows are already unit-norm -> cosine similarity is a plain dot product.
    # Sublane reduction yields the result directly as a lane-dense (1, TILE) row.
    sims = jnp.sum(x1t * x2t, axis=0, keepdims=True)
    out_ref[...] = sims[None]


def _pick_tile(p, n_pad, d_pad):
    # Rough f32 footprint per pair column of the in-kernel temporaries:
    # 2 one-hots + int32 iota (N_pad rows) and x1t / x2t / product (D_pad rows).
    per_col = 4 * (3 * n_pad + 3 * d_pad) + 16
    budget = 6 * 1024 * 1024   # conservative: fits v5e's 16 MiB scoped VMEM
    t = (budget // max(per_col, 1)) // 128 * 128
    t = max(128, min(2048, t))
    t = min(t, _round_up(p, 128))
    if p > 128:
        # Keep >= 2 grid steps so dimension_semantics=("parallel",) can shard
        # across both v7x TensorCores (no effect on single-core v5e/v6e).
        t = min(t, max(128, _round_up(pl.cdiv(p, 2), 128)))
    return t


def pair_cosine_similarity(embs, pairs):
    """Cosine similarity of embs[pairs[:,0]] vs embs[pairs[:,1]] -> (P,) float32."""
    n, d = embs.shape
    p = pairs.shape[0]

    # Normalize rows once in f32 (O(N*D)):  max(||x||, eps) clamping matches
    # torch.nn.functional.cosine_similarity; sqrt(max(w, eps^2)) == max(sqrt(w), eps).
    x = embs.astype(jnp.float32)
    inv = jax.lax.rsqrt(jnp.maximum(jnp.sum(x * x, axis=-1, keepdims=True),
                                    _EPS * _EPS))
    ent = (x * inv).astype(embs.dtype).T                      # (D, N) feature-major

    n_pad = _round_up(n, 8)
    d_pad = _round_up(d, 8)
    ent = jnp.pad(ent, ((0, d_pad - d), (0, n_pad - n)))      # O(N*D), tiny

    tile = _pick_tile(p, n_pad, d_pad)
    p_pad = _round_up(p, tile)
    # Pad only the O(P) index array; index 0 is valid, extras are sliced off.
    idx = jnp.pad(pairs.astype(jnp.int32).T, ((0, 0), (0, p_pad - p)))

    grid = p_pad // tile
    # TODO(synk): for very large N*D that no longer fits VMEM, ent would need a
    # pl.ANY HBM ref + manual double-buffered row DMA instead of a resident block.
    out = pl.pallas_call(
        _pair_cosine_kernel,
        out_shape=jax.ShapeDtypeStruct((grid, 1, tile), jnp.float32),
        grid_spec=pltpu.PrefetchScalarGridSpec(
            num_scalar_prefetch=0,
            grid=(grid,),
            in_specs=[
                pl.BlockSpec((2, tile), lambda i: (0, i)),
                pl.BlockSpec((d_pad, n_pad), lambda i: (0, 0)),   # VMEM-resident
            ],
            out_specs=pl.BlockSpec((1, 1, tile), lambda i: (i, 0, 0)),
        ),
        compiler_params=pltpu.CompilerParams(
            dimension_semantics=("parallel",),
        ),
    )(idx, ent)
    return out.reshape(-1)[:p]


def online_cosine_pair_forward(embs, pos_pairs, neg_pairs):
    """Forward of OnlineCosinePairLoss given pre-selected pair indices.

    Returns (pos_sims, neg_sims), float32 of shapes (P_pos,), (P_neg,).
    """
    # TODO(synk): pair_selector.get_pairs (label-based pair mining) has no clean
    # Pallas equivalent; pairs are supplied as index arrays mined on the host.
    n_pos = pos_pairs.shape[0]
    pairs = jnp.concatenate([pos_pairs, neg_pairs], axis=0)
    sims = pair_cosine_similarity(embs, pairs)
    return sims[:n_pos], sims[n_pos:]


def _reference_cos(x1, x2):
    w12 = jnp.sum(x1 * x2, axis=-1)
    n1 = jnp.maximum(jnp.sqrt(jnp.sum(x1 * x1, axis=-1)), _EPS)
    n2 = jnp.maximum(jnp.sqrt(jnp.sum(x2 * x2, axis=-1)), _EPS)
    return w12 / (n1 * n2)


if __name__ == "__main__":
    # Small deterministic example: 32 embeddings of dim 64, 4 classes.
    key = jax.random.PRNGKey(0)
    N, D = 32, 64
    embs = jax.random.normal(key, (N, D), dtype=jnp.float32)
    labels = [i % 4 for i in range(N)]

    # Simple deterministic "pair selector": all i<j pairs, split by label match.
    pos_list, neg_list = [], []
    for i in range(N):
        for j in range(i + 1, N):
            (pos_list if labels[i] == labels[j] else neg_list).append((i, j))
    pos_pairs = jnp.asarray(pos_list, dtype=jnp.int32)   # (112, 2)
    neg_pairs = jnp.asarray(neg_list, dtype=jnp.int32)   # (384, 2)

    pos_sims, neg_sims = online_cosine_pair_forward(embs, pos_pairs, neg_pairs)
    jax.block_until_ready((pos_sims, neg_sims))

    ref_pos = _reference_cos(embs[pos_pairs[:, 0]], embs[pos_pairs[:, 1]])
    ref_neg = _reference_cos(embs[neg_pairs[:, 0]], embs[neg_pairs[:, 1]])
    assert pos_sims.shape == (pos_pairs.shape[0],)
    assert neg_sims.shape == (neg_pairs.shape[0],)
    assert jnp.allclose(pos_sims, ref_pos, atol=1e-5, rtol=1e-5)
    assert jnp.allclose(neg_sims, ref_neg, atol=1e-5, rtol=1e-5)

    print("KERNEL_OK")
</pallas_src>

<mosaic_0001>
module attributes {stable_mosaic.version = 11 : i64} {
  func.func @_pair_cosine_kernel(%arg0: i32, %arg1: memref<2x256xi32, #tpu.memory_space<vmem>>, %arg2: memref<64x32xf32, #tpu.memory_space<vmem>>, %arg3: memref<1x1x256xf32, #tpu.memory_space<vmem>>) attributes {dimension_semantics = [#tpu.dimension_semantics<parallel>], iteration_bounds = array<i64: 2>, scalar_prefetch = 0 : i64, scratch_operands = 0 : i64, tpu.core_type = #tpu.core_type<tc>, window_params = [{transform_indices = @transform_0, window_bounds = array<i64: 2, 256>}, {pipeline_mode = #tpu.pipeline_mode<synchronous>, transform_indices = @transform_1, window_bounds = array<i64: 64, 32>}, {transform_indices = @transform_2, window_bounds = array<i64: 1, 1, 256>}]} {
    %c0 = arith.constant 0 : index
    %c0_0 = arith.constant 0 : index
    %0 = vector.load %arg2[%c0, %c0_0] : memref<64x32xf32, #tpu.memory_space<vmem>>, vector<64x32xf32>
    %1 = tpu.iota {dimensions = array<i32: 0>} : vector<32x256xi32>
    %c0_1 = arith.constant 0 : index
    %c0_2 = arith.constant 0 : index
    %2 = vector.load %arg1[%c0_1, %c0_2] : memref<2x256xi32, #tpu.memory_space<vmem>>, vector<1x256xi32>
    %3 = vector.broadcast %2 : vector<1x256xi32> to vector<32x256xi32>
    %4 = arith.cmpi eq, %1, %3 : vector<32x256xi32>
    %5 = arith.extui %4 : vector<32x256xi1> to vector<32x256xi32>
    %6 = arith.sitofp %5 : vector<32x256xi32> to vector<32x256xf32>
    %c1 = arith.constant 1 : index
    %c0_3 = arith.constant 0 : index
    %7 = vector.load %arg1[%c1, %c0_3] : memref<2x256xi32, #tpu.memory_space<vmem>>, vector<1x256xi32>
    %8 = vector.broadcast %7 : vector<1x256xi32> to vector<32x256xi32>
    %9 = arith.cmpi eq, %1, %8 : vector<32x256xi32>
    %10 = arith.extui %9 : vector<32x256xi1> to vector<32x256xi32>
    %11 = arith.sitofp %10 : vector<32x256xi32> to vector<32x256xf32>
    %cst = arith.constant dense<0.000000e+00> : vector<64x256xf32>
    %12 = tpu.matmul %0, %6, %cst {dimension_numbers = #tpu.dot_dimension_numbers<[1], [0], [0], [1], [0, 0, 1, 1], [], []>} : vector<64x32xf32>, vector<32x256xf32>, vector<64x256xf32> -> vector<64x256xf32>
    %cst_4 = arith.constant dense<0.000000e+00> : vector<64x256xf32>
    %13 = tpu.matmul %0, %11, %cst_4 {dimension_numbers = #tpu.dot_dimension_numbers<[1], [0], [0], [1], [0, 0, 1, 1], [], []>} : vector<64x32xf32>, vector<32x256xf32>, vector<64x256xf32> -> vector<64x256xf32>
    %14 = arith.mulf %12, %13 : vector<64x256xf32>
    %cst_5 = arith.constant dense<0.000000e+00> : vector<256xf32>
    %15 = vector.multi_reduction <add>, %14, %cst_5 [0] : vector<64x256xf32> to vector<256xf32>
    %16 = vector.shape_cast %15 : vector<256xf32> to vector<1x256xf32>
    %17 = vector.shape_cast %16 : vector<1x256xf32> to vector<1x1x256xf32>
    %c0_6 = arith.constant 0 : index
    %c0_7 = arith.constant 0 : index
    %c0_8 = arith.constant 0 : index
    %18 = vector.load %arg3[%c0_6, %c0_7, %c0_8] : memref<1x1x256xf32, #tpu.memory_space<vmem>>, vector<1x1x256xf32>
    tpu.vector_store %arg3[%c0_6, %c0_7, %c0_8], %17 {strides = array<i32>} : memref<1x1x256xf32, #tpu.memory_space<vmem>>, vector<1x1x256xf32>,
    return
  }
  func.func @transform_0(%arg0: i32) -> (i32, i32) {
    %c0_i32 = arith.constant 0 : i32
    %c0_i32_0 = arith.constant 0 : i32
    return %c0_i32, %arg0 : i32, i32
  }
  func.func @transform_1(%arg0: i32) -> (i32, i32) {
    %c0_i32 = arith.constant 0 : i32
    %c0_i32_0 = arith.constant 0 : i32
    %c0_i32_1 = arith.constant 0 : i32
    return %c0_i32, %c0_i32_0 : i32, i32
  }
  func.func @transform_2(%arg0: i32) -> (i32, i32, i32) {
    %c0_i32 = arith.constant 0 : i32
    %c0_i32_0 = arith.constant 0 : i32
    %c0_i32_1 = arith.constant 0 : i32
    return %arg0, %c0_i32, %c0_i32_0 : i32, i32, i32
  }
}

</mosaic_0001>

<llo_original>
// kernel: tpu_custom_call.1
$region0: #{tpu_custom_call.1}
  #allocation0 [shape = 'u32[]', space=smem, size = 0x4, offset = 0x4, fixed_abs, tag = 'smem constant byte address 0x4 - core index']
  #allocation1 [shape = 'u32[144,128]{1,0:T(1,128)}', space=vmem, size = 0x12000, scoped, tag = 'internal scratch']
  %s0 = inlined_call_operand.vmem [shape: s32[2,512], index: 0, kind: input, shape index: {}]
  %s1 = inlined_call_operand.vmem [shape: f32[64,32], index: 1, kind: input, shape index: {}]
  %s2 = inlined_call_operand.hbm [shape: f32[2,1,256], index: 2, kind: output, shape index: {}]
  %s3 = sld [smem:[#allocation0]]
  $region41: #{tpu_custom_call.1} parent=0
    _
  %s5 = ssub.s32 1, %s3
  %s6 = scalar_select 0, %s5, %s3
  $region1: #{tpu_custom_call.1} parent=0
    #allocation2 [shape = 'u8[2048]{0}', space=vmem, size = 0x800, scoped, tag = 'output window, operand 0']
    #allocation3 [shape = 's32[2]{0}', space=sflag, size = 0x8, scoped, tag = 'scoped memory for tpu_custom_call.1']
    %7 = vsyncpa [#allocation3], 0
    %s8 = scalar_lea.sflag [#allocation3], 1
    %9 = vsyncpa %s8, 0
    loop: start=0, step=1, limit=4
    $region2: #{tpu_custom_call.1} parent=1 // loop_pre_header
      _
    $region3: #{tpu_custom_call.1} parent=1 // loop_header
      %s11 = sphi 0, %s15
      %p12 = scmp.ge.s32.totalorder %s11, 4
      %s21 = sphi 0, %s23
      %s24 = sphi 0, %s21
      %s25 = sphi 0, %s24
      %s41 = sphi 0, %s25
      %s45 = sphi 0, %s45
      %s47 = sphi 0, %s45
      %s48 = sphi 0, %s47
      %s62 = sphi 0, %s48
      %s68 = sphi 0, %s70
      %s71 = sphi 0, %s68
      %s72 = sphi 0, %s71
      %s88 = sphi 0, %s72
    $region4: #{tpu_custom_call.1} parent=1 // loop_header_branch
      %14 = sbr.rel (%p12) target = $region8
    $region5: #{tpu_custom_call.1} parent=1 // loop_body
      %s16 = ssub.s32 %s11, 1
      %s17 = ssub.s32 %s11, 2
      %s18 = sadd.s32 %s11, 1
      %s19 = ssub.s32 %s11, %s18
      %p20 = scmp.eq.s32.totalorder %s19, 0
      %s22 = sadd.s32 %s21, 1
      %s23 = scalar_select %p20, %s21, %s22
      %p26 = pneg %p20
      %p27 = scmp.eq.s32.totalorder %s11, 1
      %p28 = por %p26, %p27
      %p29 = scmp.ne.s32.totalorder %s21, %s24
      %p30 = scmp.eq.s32.totalorder %s11, 0
      %p31 = por %p29, %p30
      %p32 = scmp.ne.s32.totalorder %s21, %s24
      %p33 = scmp.eq.s32.totalorder %s16, 1
      %p34 = por %p32, %p33
      %p35 = scmp.ne.s32.totalorder %s24, %s25
      %p36 = scmp.eq.s32.totalorder %s16, 0
      %p37 = por %p35, %p36
      %p38 = scmp.ne.s32.totalorder %s24, %s25
      %p39 = scmp.eq.s32.totalorder %s17, 1
      %p40 = por %p38, %p39
      %p42 = scmp.ne.s32.totalorder %s25, %s41
      %p43 = scmp.eq.s32.totalorder %s17, 0
      %p44 = por %p42, %p43
      %s46 = sadd.s32 %s45, 1
      %p49 = scmp.eq.s32.totalorder %s11, 1
      %p50 = scmp.ne.s32.totalorder %s45, %s47
      %p51 = scmp.eq.s32.totalorder %s11, 0
      %p52 = por %p50, %p51
      %p53 = scmp.ne.s32.totalorder %s45, %s47
      %p54 = scmp.eq.s32.totalorder %s16, 1
      %p55 = por %p53, %p54
      %p56 = scmp.ne.s32.totalorder %s47, %s48
      %p57 = scmp.eq.s32.totalorder %s16, 0
      %p58 = por %p56, %p57
      %p59 = scmp.ne.s32.totalorder %s47, %s48
      %p60 = scmp.eq.s32.totalorder %s17, 1
      %p61 = por %p59, %p60
      %p63 = scmp.ne.s32.totalorder %s48, %s62
      %p64 = scmp.eq.s32.totalorder %s17, 0
      %p65 = por %p63, %p64
      %s66 = ssub.s32 %s11, %s18
      %p67 = scmp.eq.s32.totalorder %s66, 0
      %s69 = sadd.s32 %s68, 1
      %s70 = scalar_select %p67, %s68, %s69
      %p73 = pneg %p67
      %p74 = scmp.eq.s32.totalorder %s11, 1
      %p75 = por %p73, %p74
      %p76 = scmp.ne.s32.totalorder %s68, %s71
      %p77 = scmp.eq.s32.totalorder %s11, 0
      %p78 = por %p76, %p77
      %p79 = scmp.ne.s32.totalorder %s68, %s71
      %p80 = scmp.eq.s32.totalorder %s16, 1
      %p81 = por %p79, %p80
      %p82 = scmp.ne.s32.totalorder %s71, %s72
      %p83 = scmp.eq.s32.totalorder %s16, 0
      %p84 = por %p82, %p83
      %p85 = scmp.ne.s32.totalorder %s71, %s72
      %p86 = scmp.eq.s32.totalorder %s17, 1
      %p87 = por %p85, %p86
      %p89 = scmp.ne.s32.totalorder %s72, %s88
      %p90 = scmp.eq.s32.totalorder %s17, 0
      %p91 = por %p89, %p90
      %p92 = scmp.le.s32.totalorder 1, %s11
      %p93 = scmp.lt.s32.totalorder %s11, 3
      %p94 = pnand %p92, %p93
      %p95 = pneg %p94
      // Predicated region
      $region9: #{tpu_custom_call.1} parent=5 // pred_check
        _
      $region10: #{tpu_custom_call.1} parent=5 // pred_check_branch
        %97 = sbr.rel (%p94) target = $region12
      $region11: #{tpu_custom_call.1} parent=5 // pred_region
        %s98 = ssub.s32 %s11, 1
        // Predicated region
        $region13: #{tpu_custom_call.1} parent=11 // pred_check
          %p99 = pneg %p58
        $region14: #{tpu_custom_call.1} parent=11 // pred_check_branch
          %101 = sbr.rel (%p99) target = $region16
        $region15: #{tpu_custom_call.1} parent=11 // pred_region
          _
        $region16: #{tpu_custom_call.1} parent=11 // pred_fallthru
          _
      $region12: #{tpu_custom_call.1} parent=5 // pred_fallthru
        _
      %p102 = scmp.lt.s32.totalorder %s11, 2
      // Predicated region
      $region17: #{tpu_custom_call.1} parent=5 // pred_check
        %p103 = pneg %p102
      $region18: #{tpu_custom_call.1} parent=5 // pred_check_branch
        %105 = sbr.rel (%p103) target = $region20
      $region19: #{tpu_custom_call.1} parent=5 // pred_region
        // Predicated region
        $region21: #{tpu_custom_call.1} parent=19 // pred_check
          %p106 = pneg %p31
        $region22: #{tpu_custom_call.1} parent=19 // pred_check_branch
          %108 = sbr.rel (%p106) target = $region24
        $region23: #{tpu_custom_call.1} parent=19 // pred_region
          %s109 = smul.u32 2, %s11
          %p110 = scmp.lt.s32.totalorder %s109, 3
          %s111 = scalar_select %p110, %s109, 3
          %s112 = smul.addr %s111, 2
          %s113 = scalar_lea.vmem %s0, %s112
          %s114 = smul.u32 2, %s11
        $region24: #{tpu_custom_call.1} parent=19 // pred_fallthru
          _
      $region20: #{tpu_custom_call.1} parent=5 // pred_fallthru
        _
      %p115 = scmp.le.s32.totalorder 1, %s11
      %p116 = scmp.lt.s32.totalorder %s11, 3
      %p117 = pnand %p115, %p116
      %p118 = pneg %p117
      // Predicated region
      $region25: #{tpu_custom_call.1} parent=5 // pred_check
        _
      $region26: #{tpu_custom_call.1} parent=5 // pred_check_branch
        %120 = sbr.rel (%p117) target = $region28
      $region27: #{tpu_custom_call.1} parent=5 // pred_region
        %s121 = ssub.s32 %s11, 1
        %s122 = smul.u32 2, %s16
        %p123 = scmp.lt.s32.totalorder %s122, 3
        %s124 = scalar_select %p123, %s122, 3
        %s125 = smul.addr %s124, 2
        %s126 = scalar_lea.vmem %s0, %s125
        %p127 = pneg %p37
        %p128 = pneg %p34
        %p129 = pneg %p58
        %p130 = pneg %p55
        %p131 = pneg %p84
        %p132 = pneg %p81
        %s133 = sand.u32 %s71, 1
        %s134 = scalar_lea.sflag [#allocation3], %s133
        %s135 = sand.u32 %s71, 1
        %s136 = smul.addr %s135, 2
        %s137 = scalar_lea.vmem [#allocation2], %s136
        %s138 = smul.u32 2, %s16
        %p139 = scmp.lt.s32.totalorder %s138, 3
        %s140 = scalar_select %p139, %s138, 3
        %s141 = smul.addr %s140, 2
        %s142 = scalar_lea.vmem %s0, %s141
        %s143 = smul.u32 2, %s16
        %v144 = vld [vmem:[%s1] sm:$0xff]
        %v145 = vld [vmem:[%s1 + $0x8] sm:$0xff]
        %v146 = vld [vmem:[%s1 + $0x10] sm:$0xff]
        %v147 = vld [vmem:[%s1 + $0x18] sm:$0xff]
        %v148 = vld [vmem:[%s1 + $0x20] sm:$0xff]
        %v149 = vld [vmem:[%s1 + $0x28] sm:$0xff]
        %v150 = vld [vmem:[%s1 + $0x30] sm:$0xff]
        %v151 = vld [vmem:[%s1 + $0x38] sm:$0xff]
        %v152 = vlaneseq
        %v153 = vshrl.u32 %v152, 7
        %v154 = vadd.s32 %v153, 8
        %v155 = vadd.s32 %v153, 16
        %v156 = vadd.s32 %v153, 24
        %v157 = vld [vmem:[%s142] ss:$2 sm:$0x3]
        %v158 = vlaneseq
        %v159 = vshrl.u32 %v158, 7
        %v160 = vsub.s32 0, %v159
        %v161 = vrot.slane %v157, %v160
        %v162 = vlaneseq
        %v163 = vshrl.u32 %v162, 7
        %v164 = vsub.s32 1, %v163
        %v165 = vrot.slane %v157, %v164
        %vm166 = vcmp.eq.s32.totalorder %v153, %v161
        %vm167 = vcmp.eq.s32.totalorder %v153, %v165
        %vm168 = vcmp.eq.s32.totalorder %v154, %v161
        %vm169 = vcmp.eq.s32.totalorder %v154, %v165
        %vm170 = vcmp.eq.s32.totalorder %v155, %v161
        %vm171 = vcmp.eq.s32.totalorder %v155, %v165
        %vm172 = vcmp.eq.s32.totalorder %v156, %v161
        %vm173 = vcmp.eq.s32.totalorder %v156, %v165
        %v174 = vsel %vm166, 1, 0
        %v175 = vsel %vm167, 1, 0
        %v176 = vsel %vm168, 1, 0
        %v177 = vsel %vm169, 1, 0
        %v178 = vsel %vm170, 1, 0
        %v179 = vsel %vm171, 1, 0
        %v180 = vsel %vm172, 1, 0
        %v181 = vsel %vm173, 1, 0
        %v182 = vcvt.s32.f32 %v174
        %v183 = vcvt.s32.f32 %v175
        %v184 = vcvt.s32.f32 %v176
        %v185 = vcvt.s32.f32 %v177
        %v186 = vcvt.s32.f32 %v178
        %v187 = vcvt.s32.f32 %v179
        %v188 = vcvt.s32.f32 %v180
        %v189 = vcvt.s32.f32 %v181
        %s190 = scalar_lea.vmem %s142, 1
        %v191 = vld [vmem:[%s190] ss:$2 sm:$0x3]
        %v192 = vlaneseq
        %v193 = vshrl.u32 %v192, 7
        %v194 = vsub.s32 0, %v193
        %v195 = vrot.slane %v191, %v194
        %v196 = vlaneseq
        %v197 = vshrl.u32 %v196, 7
        %v198 = vsub.s32 1, %v197
        %v199 = vrot.slane %v191, %v198
        %vm200 = vcmp.eq.s32.totalorder %v153, %v195
        %vm201 = vcmp.eq.s32.totalorder %v153, %v199
        %vm202 = vcmp.eq.s32.totalorder %v154, %v195
        %vm203 = vcmp.eq.s32.totalorder %v154, %v199
        %vm204 = vcmp.eq.s32.totalorder %v155, %v195
        %vm205 = vcmp.eq.s32.totalorder %v155, %v199
        %vm206 = vcmp.eq.s32.totalorder %v156, %v195
        %vm207 = vcmp.eq.s32.totalorder %v156, %v199
        %v208 = vsel %vm200, 1, 0
        %v209 = vsel %vm201, 1, 0
        %v210 = vsel %vm202, 1, 0
        %v211 = vsel %vm203, 1, 0
        %v212 = vsel %vm204, 1, 0
        %v213 = vsel %vm205, 1, 0
        %v214 = vsel %vm206, 1, 0
        %v215 = vsel %vm207, 1, 0
        %v216 = vcvt.s32.f32 %v208
        %v217 = vcvt.s32.f32 %v209
        %v218 = vcvt.s32.f32 %v210
        %v219 = vcvt.s32.f32 %v211
        %v220 = vcvt.s32.f32 %v212
        %v221 = vcvt.s32.f32 %v213
        %v222 = vcvt.s32.f32 %v214
        %v223 = vcvt.s32.f32 %v215
        %vm224 = vcmask 261120
        %v226 = vsel %vm224, %v144, 0
        %v229 = vsel %vm224, %v145, 0
        %v232 = vsel %vm224, %v146, 0
        %v235 = vsel %vm224, %v147, 0
        %v238 = vsel %vm224, %v148, 0
        %v241 = vsel %vm224, %v149, 0
        %v244 = vsel %vm224, %v150, 0
        %v247 = vsel %vm224, %v151, 0
        %249 = vmatprep.subr.mxu0 %v183
        %250 = vmatpush1.msra.mxu0 %v182
        %251 = vmatprep.subr.mxu0 %v185
        %252 = vmatpush1.msra.mxu0 %v184
        %253 = vmatprep.subr.mxu0 %v187
        %254 = vmatpush1.msra.mxu0 %v186
        %255 = vmatprep.subr.mxu0 %v189
        %256 = vmatpush1.msra.mxu0 %v188
        %257 = vmatprep.subr.mxu0 0.0
        %258 = vmatpush1.msra.mxu0 0.0
        %259 = vmatprep.subr.mxu0 0.0
        %260 = vmatpush1.msra.mxu0 0.0
        %261 = vmatprep.subr.mxu0 0.0
        %262 = vmatpush1.msra.mxu0 0.0
        %263 = vmatprep.subr.mxu0 0.0
        %264 = vmatpush1.msra.mxu0 0.0
        %265 = vmatprep.subr.mxu0 0.0
        %266 = vmatpush1.msra.mxu0 0.0
        %267 = vmatprep.subr.mxu0 0.0
        %268 = vmatpush1.msra.mxu0 0.0
        %269 = vmatprep.subr.mxu0 0.0
        %270 = vmatpush1.msra.mxu0 0.0
        %271 = vmatprep.subr.mxu0 0.0
        %272 = vmatpush1.msra.mxu0 0.0
        %273 = vmatprep.subr.mxu0 0.0
        %274 = vmatpush1.msra.mxu0 0.0
        %275 = vmatprep.subr.mxu0 0.0
        %276 = vmatpush1.msra.mxu0 0.0
        %277 = vmatprep.subr.mxu0 0.0
        %278 = vmatpush1.msra.mxu0 0.0
        %279 = vmatprep.subr.mxu0 0.0
        %280 = vmatpush1.msra.mxu0 0.0
        %281 = vmatprep.subr.mxu0 0.0
        %282 = vmatpush1.msra.mxu0 0.0
        %283 = vmatprep.subr.mxu0 0.0
        %284 = vmatpush1.msra.mxu0 0.0
        %285 = vmatprep.subr.mxu0 0.0
        %286 = vmatpush1.msra.mxu0 0.0
        %287 = vmatprep.subr.mxu0 0.0
        %288 = vmatpush1.msra.mxu0 0.0
        %289 = vmatprep.subr.mxu0 0.0
        %290 = vmatpush1.msra.mxu0 0.0
        %291 = vmatprep.subr.mxu0 0.0
        %292 = vmatpush1.msra.mxu0 0.0
        %293 = vmatprep.subr.mxu0 0.0
        %294 = vmatpush1.msra.mxu0 0.0
        %295 = vmatprep.subr.mxu0 0.0
        %296 = vmatpush1.msra.mxu0 0.0
        %297 = vmatprep.subr.mxu0 0.0
        %298 = vmatpush1.msra.mxu0 0.0
        %299 = vmatprep.subr.mxu0 0.0
        %300 = vmatpush1.msra.mxu0 0.0
        %301 = vmatprep.subr.mxu0 0.0
        %302 = vmatpush1.msra.mxu0 0.0
        %303 = vmatprep.subr.mxu0 0.0
        %304 = vmatpush1.msra.mxu0 0.0
        %305 = vmatprep.subr.mxu0 0.0
        %306 = vmatpush1.msra.mxu0 0.0
        %307 = vmatprep.subr.mxu0 0.0
        %308 = vmatpush1.msra.mxu0 0.0
        %309 = vmatprep.subr.mxu0 0.0
        %310 = vmatpush1.msra.mxu0 0.0
        %311 = vmatprep.subr.mxu0 0.0
        %312 = vmatpush1.msra.mxu0 0.0
        %313 = vmatprep.mubr.f32.mxu0 0.0
        %314 = vmatmul.mubr.f32.gmra.mrb[0].mxu0 %v226
        %v315 = vpop.f32.mrb[0].mxu0
        %v316 = vadd.f32 0.0, %v315
        %v317 = vpop.f32.mrb[0].mxu0
        %v318 = vadd.f32 0.0, %v317
        %319 = vmatprep.mubr.f32.mxu0 0.0
        %320 = vmatmul.mubr.f32.gmra.mrb[0].mxu0 %v229
        %v321 = vpop.f32.mrb[0].mxu0
        %v322 = vadd.f32 0.0, %v321
        %v323 = vpop.f32.mrb[0].mxu0
        %v324 = vadd.f32 0.0, %v323
        %325 = vmatprep.mubr.f32.mxu0 0.0
        %326 = vmatmul.mubr.f32.gmra.mrb[0].mxu0 %v232
        %v327 = vpop.f32.mrb[0].mxu0
        %v328 = vadd.f32 0.0, %v327
        %v329 = vpop.f32.mrb[0].mxu0
        %v330 = vadd.f32 0.0, %v329
        %331 = vmatprep.mubr.f32.mxu0 0.0
        %332 = vmatmul.mubr.f32.gmra.mrb[0].mxu0 %v235
        %v333 = vpop.f32.mrb[0].mxu0
        %v334 = vadd.f32 0.0, %v333
        %v335 = vpop.f32.mrb[0].mxu0
        %v336 = vadd.f32 0.0, %v335
        %337 = vmatprep.mubr.f32.mxu0 0.0
        %338 = vmatmul.mubr.f32.gmra.mrb[0].mxu0 %v238
        %v339 = vpop.f32.mrb[0].mxu0
        %v340 = vadd.f32 0.0, %v339
        %v341 = vpop.f32.mrb[0].mxu0
        %v342 = vadd.f32 0.0, %v341
        %343 = vmatprep.mubr.f32.mxu0 0.0
        %344 = vmatmul.mubr.f32.gmra.mrb[0].mxu0 %v241
        %v345 = vpop.f32.mrb[0].mxu0
        %v346 = vadd.f32 0.0, %v345
        %v347 = vpop.f32.mrb[0].mxu0
        %v348 = vadd.f32 0.0, %v347
        %349 = vmatprep.mubr.f32.mxu0 0.0
        %350 = vmatmul.mubr.f32.gmra.mrb[0].mxu0 %v244
        %v351 = vpop.f32.mrb[0].mxu0
        %v352 = vadd.f32 0.0, %v351
        %v353 = vpop.f32.mrb[0].mxu0
        %v354 = vadd.f32 0.0, %v353
        %355 = vmatprep.mubr.f32.mxu0 0.0
        %356 = vmatmul.mubr.f32.gmra.mrb[0].mxu0 %v247
        %v357 = vpop.f32.mrb[0].mxu0
        %v358 = vadd.f32 0.0, %v357
        %v359 = vpop.f32.mrb[0].mxu0
        %v360 = vadd.f32 0.0, %v359
        %361 = vdwg.mxu0
        %362 = vmatprep.subr.mxu0 %v217
        %363 = vmatpush1.msra.mxu0 %v216
        %364 = vmatprep.subr.mxu0 %v219
        %365 = vmatpush1.msra.mxu0 %v218
        %366 = vmatprep.subr.mxu0 %v221
        %367 = vmatpush1.msra.mxu0 %v220
        %368 = vmatprep.subr.mxu0 %v223
        %369 = vmatpush1.msra.mxu0 %v222
        %370 = vmatprep.subr.mxu0 0.0
        %371 = vmatpush1.msra.mxu0 0.0
        %372 = vmatprep.subr.mxu0 0.0
        %373 = vmatpush1.msra.mxu0 0.0
        %374 = vmatprep.subr.mxu0 0.0
        %375 = vmatpush1.msra.mxu0 0.0
        %376 = vmatprep.subr.mxu0 0.0
        %377 = vmatpush1.msra.mxu0 0.0
        %378 = vmatprep.subr.mxu0 0.0
        %379 = vmatpush1.msra.mxu0 0.0
        %380 = vmatprep.subr.mxu0 0.0
        %381 = vmatpush1.msra.mxu0 0.0
        %382 = vmatprep.subr.mxu0 0.0
        %383 = vmatpush1.msra.mxu0 0.0
        %384 = vmatprep.subr.mxu0 0.0
        %385 = vmatpush1.msra.mxu0 0.0
        %386 = vmatprep.subr.mxu0 0.0
        %387 = vmatpush1.msra.mxu0 0.0
        %388 = vmatprep.subr.mxu0 0.0
        %389 = vmatpush1.msra.mxu0 0.0
        %390 = vmatprep.subr.mxu0 0.0
        %391 = vmatpush1.msra.mxu0 0.0
        %392 = vmatprep.subr.mxu0 0.0
        %393 = vmatpush1.msra.mxu0 0.0
        %394 = vmatprep.subr.mxu0 0.0
        %395 = vmatpush1.msra.mxu0 0.0
        %396 = vmatprep.subr.mxu0 0.0
        %397 = vmatpush1.msra.mxu0 0.0
        %398 = vmatprep.subr.mxu0 0.0
        %399 = vmatpush1.msra.mxu0 0.0
        %400 = vmatprep.subr.mxu0 0.0
        %401 = vmatpush1.msra.mxu0 0.0
        %402 = vmatprep.subr.mxu0 0.0
        %403 = vmatpush1.msra.mxu0 0.0
        %404 = vmatprep.subr.mxu0 0.0
        %405 = vmatpush1.msra.mxu0 0.0
        %406 = vmatprep.subr.mxu0 0.0
        %407 = vmatpush1.msra.mxu0 0.0
        %408 = vmatprep.subr.mxu0 0.0
        %409 = vmatpush1.msra.mxu0 0.0
        %410 = vmatprep.subr.mxu0 0.0
        %411 = vmatpush1.msra.mxu0 0.0
        %412 = vmatprep.subr.mxu0 0.0
        %413 = vmatpush1.msra.mxu0 0.0
        %414 = vmatprep.subr.mxu0 0.0
        %415 = vmatpush1.msra.mxu0 0.0
        %416 = vmatprep.subr.mxu0 0.0
        %417 = vmatpush1.msra.mxu0 0.0
        %418 = vmatprep.subr.mxu0 0.0
        %419 = vmatpush1.msra.mxu0 0.0
        %420 = vmatprep.subr.mxu0 0.0
        %421 = vmatpush1.msra.mxu0 0.0
        %422 = vmatprep.subr.mxu0 0.0
        %423 = vmatpush1.msra.mxu0 0.0
        %424 = vmatprep.subr.mxu0 0.0
        %425 = vmatpush1.msra.mxu0 0.0
        %426 = vmatprep.mubr.f32.mxu0 0.0
        %427 = vmatmul.mubr.f32.gmra.mrb[0].mxu0 %v226
        %v428 = vpop.f32.mrb[0].mxu0
        %v429 = vadd.f32 0.0, %v428
        %v430 = vpop.f32.mrb[0].mxu0
        %v431 = vadd.f32 0.0, %v430
        %432 = vmatprep.mubr.f32.mxu0 0.0
        %433 = vmatmul.mubr.f32.gmra.mrb[0].mxu0 %v229
        %v434 = vpop.f32.mrb[0].mxu0
        %v435 = vadd.f32 0.0, %v434
        %v436 = vpop.f32.mrb[0].mxu0
        %v437 = vadd.f32 0.0, %v436
        %438 = vmatprep.mubr.f32.mxu0 0.0
        %439 = vmatmul.mubr.f32.gmra.mrb[0].mxu0 %v232
        %v440 = vpop.f32.mrb[0].mxu0
        %v441 = vadd.f32 0.0, %v440
        %v442 = vpop.f32.mrb[0].mxu0
        %v443 = vadd.f32 0.0, %v442
        %444 = vmatprep.mubr.f32.mxu0 0.0
        %445 = vmatmul.mubr.f32.gmra.mrb[0].mxu0 %v235
        %v446 = vpop.f32.mrb[0].mxu0
        %v447 = vadd.f32 0.0, %v446
        %v448 = vpop.f32.mrb[0].mxu0
        %v449 = vadd.f32 0.0, %v448
        %450 = vmatprep.mubr.f32.mxu0 0.0
        %451 = vmatmul.mubr.f32.gmra.mrb[0].mxu0 %v238
        %v452 = vpop.f32.mrb[0].mxu0
        %v453 = vadd.f32 0.0, %v452
        %v454 = vpop.f32.mrb[0].mxu0
        %v455 = vadd.f32 0.0, %v454
        %456 = vmatprep.mubr.f32.mxu0 0.0
        %457 = vmatmul.mubr.f32.gmra.mrb[0].mxu0 %v241
        %v458 = vpop.f32.mrb[0].mxu0
        %v459 = vadd.f32 0.0, %v458
        %v460 = vpop.f32.mrb[0].mxu0
        %v461 = vadd.f32 0.0, %v460
        %462 = vmatprep.mubr.f32.mxu0 0.0
        %463 = vmatmul.mubr.f32.gmra.mrb[0].mxu0 %v244
        %v464 = vpop.f32.mrb[0].mxu0
        %v465 = vadd.f32 0.0, %v464
        %v466 = vpop.f32.mrb[0].mxu0
        %v467 = vadd.f32 0.0, %v466
        %468 = vmatprep.mubr.f32.mxu0 0.0
        %469 = vmatmul.mubr.f32.gmra.mrb[0].mxu0 %v247
        %v470 = vpop.f32.mrb[0].mxu0
        %v471 = vadd.f32 0.0, %v470
        %v472 = vpop.f32.mrb[0].mxu0
        %v473 = vadd.f32 0.0, %v472
        %474 = vdwg.mxu0
        %v475 = vmul.f32 %v316, %v429
        %v476 = vmul.f32 %v318, %v431
        %v477 = vmul.f32 %v322, %v435
        %v478 = vmul.f32 %v324, %v437
        %v479 = vmul.f32 %v328, %v441
        %v480 = vmul.f32 %v330, %v443
        %v481 = vmul.f32 %v334, %v447
        %v482 = vmul.f32 %v336, %v449
        %v483 = vmul.f32 %v340, %v453
        %v484 = vmul.f32 %v342, %v455
        %v485 = vmul.f32 %v346, %v459
        %v486 = vmul.f32 %v348, %v461
        %v487 = vmul.f32 %v352, %v465
        %v488 = vmul.f32 %v354, %v467
        %v489 = vmul.f32 %v358, %v471
        %v490 = vmul.f32 %v360, %v473
        %v491 = vadd.f32 %v475, %v477
        %v492 = vadd.f32 %v491, %v479
        %v493 = vadd.f32 %v492, %v481
        %v494 = vadd.f32 %v493, %v483
        %v495 = vadd.f32 %v494, %v485
        %v496 = vadd.f32 %v495, %v487
        %v497 = vadd.f32 %v496, %v489
        %v498 = vrot.slane %v497, 4
        %v499 = vadd.f32 %v497, %v498
        %v500 = vrot.slane %v499, 2
        %v501 = vadd.f32 %v499, %v500
        %v502 = vrot.slane %v501, 1
        %v503 = vadd.f32 %v501, %v502
        %v504 = vadd.f32 %v476, %v478
        %v505 = vadd.f32 %v504, %v480
        %v506 = vadd.f32 %v505, %v482
        %v507 = vadd.f32 %v506, %v484
        %v508 = vadd.f32 %v507, %v486
        %v509 = vadd.f32 %v508, %v488
        %v510 = vadd.f32 %v509, %v490
        %v511 = vrot.slane %v510, 4
        %v512 = vadd.f32 %v510, %v511
        %v513 = vrot.slane %v512, 2
        %v514 = vadd.f32 %v512, %v513
        %v515 = vrot.slane %v514, 1
        %v516 = vadd.f32 %v514, %v515
        %v519 = vcombine.low %v503, %v516
        %v521 = vunpack.c.l.s4 1966171168
        %v522 = vunpack.c.0.s8 %v521
        %v523 = vlaneseq
        %v524 = vshrl.u32 %v523, 7
        %v525 = vsub.s32 %v522, %v524
        %v526 = vrot.slane %v519, %v525
        %v528 = vunpack.c.l.s4 1966171168
        %v529 = vunpack.c.0.s8 %v528
        %v530 = vlaneseq
        %v531 = vshrl.u32 %v530, 7
        %v532 = vsub.s32 %v529, %v531
        %v533 = vrot.slane %v526, %v532
        %v535 = vlaneseq
        %vm536 = vcmp.ge.s32.totalorder %v535, 0
        %vm537 = vcmp.lt.s32.totalorder %v535, 256
        %vm538 = vmand %vm536, %vm537
        %539 = vst.msk [vmem:[%s137] sm:$0x3] %vm538, %v533
        %s540 = sand.u32 %s71, 1
        %s541 = scalar_lea.sflag [#allocation3], %s540
        %s542 = sand.u32 %s71, 1
        %s543 = smul.addr %s542, 2
        %s544 = scalar_lea.vmem [#allocation2], %s543
        // Predicated region
        $region29: #{tpu_custom_call.1} parent=27 // pred_check
          %p545 = pneg %p81
        $region30: #{tpu_custom_call.1} parent=27 // pred_check_branch
          %547 = sbr.rel (%p545) target = $region32
        $region31: #{tpu_custom_call.1} parent=27 // pred_region
          %s549 = ssub.s32 32, 32
          %550 = vsyncadd %s541, %s549
          %s551 = smul.addr %s16, 2
          %s552 = smul.addr %s551, 16
          %s553 = scalar_lea.hbm %s2, %s552
          %s555 = sshll.u32 %s544, 4
          %s556 = int_to_ptr.vmem [resolvable:$true] %s555
          %558 = dma.vmem_to_hbm [thread:$0]  %s556, 32, %s553, %s541
        $region32: #{tpu_custom_call.1} parent=27 // pred_fallthru
          _
      $region28: #{tpu_custom_call.1} parent=5 // pred_fallthru
        _
      %p559 = scmp.le.s32.totalorder 2, %s11
      // Predicated region
      $region33: #{tpu_custom_call.1} parent=5 // pred_check
        %p560 = pneg %p559
      $region34: #{tpu_custom_call.1} parent=5 // pred_check_branch
        %562 = sbr.rel (%p560) target = $region36
      $region35: #{tpu_custom_call.1} parent=5 // pred_region
        %s563 = ssub.s32 %s11, 2
        // Predicated region
        $region37: #{tpu_custom_call.1} parent=35 // pred_check
          %p564 = pneg %p87
        $region38: #{tpu_custom_call.1} parent=35 // pred_check_branch
          %566 = sbr.rel (%p564) target = $region40
        $region39: #{tpu_custom_call.1} parent=35 // pred_region
          %s567 = sand.u32 %s72, 1
          %s568 = scalar_lea.sflag [#allocation3], %s567
          %s569 = sand.u32 %s72, 1
          %s570 = smul.addr %s569, 2
          %s571 = scalar_lea.vmem [#allocation2], %s570
          %572 = dma.done %s568, 32
        $region40: #{tpu_custom_call.1} parent=35 // pred_fallthru
          _
      $region36: #{tpu_custom_call.1} parent=5 // pred_fallthru
        _
    $region6: #{tpu_custom_call.1} parent=1 // loop_footer
      %s15 = sadd.s32 1, %s11
    $region7: #{tpu_custom_call.1} parent=1 // loop_footer_branch
      %10 = sbr.rel target = $region3
    $region8: #{tpu_custom_call.1} parent=1 // loop_exit
      _
    %573 = vsyncpa [#allocation3], 1
    %s574 = scalar_lea.sflag [#allocation3], 1
    %575 = vsyncpa %s574, 1

</llo_original>
